<compile_context>
chip_gen: v6e
topology: v6e:2x2x1
jax: 0.10.0
libtpu: 0.0.40
codegen_flags: <defaults>
</compile_context>

<pallas_src>
import jax
import jax.numpy as jnp
from jax.experimental import pallas as pl
from jax.experimental.pallas import tpu as pltpu

# ----------------------- Quantizer (num_bits = 8) ---------------------------
NUM_BITS = 8
QMAX = 2 ** (NUM_BITS - 1) - 1          # 127
QMIN = -(2 ** (NUM_BITS - 1))           # -128


def _quant_dequant_kernel(qp_ref, x_ref, o_ref):
    """Affine int8 quantize -> dequantize round trip for one row tile.

    qp_ref (SMEM, f32[2]) holds [scale, zero_point] (the PyTorch Quantizer's
    per-tensor host scalars). q is clamped to [QMIN, QMAX] before the int8
    cast (saturating, unlike a raw wrap-around cast).
    """
    scale = qp_ref[0]
    zp = qp_ref[1]
    x = x_ref[...]
    q = jnp.round(x / scale + zp)
    q = jnp.clip(q, float(QMIN), float(QMAX)).astype(jnp.int8)
    o_ref[...] = (q.astype(jnp.float32) - zp) * scale


def _row_tile(rows: int) -> int:
    for t in (128, 64, 32, 16, 8):
        if rows % t == 0:
            return t
    return rows


def quantize_dequantize(x: jax.Array) -> jax.Array:
    """Quantizer.quantize_tensor + dequantize_tensor (load time, per tensor)."""
    x = x.astype(jnp.float32)
    orig_shape = x.shape
    x2 = x.reshape(1, -1) if x.ndim == 1 else x
    r, c = x2.shape

    # Per-tensor scalars (reference computes these as host .item() scalars).
    data_min = jnp.min(x2)
    data_max = jnp.max(x2)
    scale = jnp.maximum((data_max - data_min) / float(QMAX - QMIN), 1e-8)
    zero_point = jnp.round(float(QMIN) - data_min / scale)
    qp = jnp.stack([scale, zero_point]).astype(jnp.float32)      # (2,)

    tr = _row_tile(r)
    out = pl.pallas_call(
        _quant_dequant_kernel,
        out_shape=jax.ShapeDtypeStruct((r, c), jnp.float32),
        grid=(r // tr,),
        in_specs=[
            pl.BlockSpec(memory_space=pltpu.MemorySpace.SMEM),   # [scale, zp]
            pl.BlockSpec((tr, c), lambda i: (i, 0)),
        ],
        out_specs=pl.BlockSpec((tr, c), lambda i: (i, 0)),
        compiler_params=pltpu.CompilerParams(
            dimension_semantics=("parallel",)),
    )(qp, x2)
    return out.reshape(orig_shape)


# ------------------- original_model forward (Pallas) ------------------------
def _fwd_kernel(ids_ref, emb_hbm, w1_ref, b1_ref, w2_ref, b2_ref,
                o_ref, xbuf, sem):
    """One tile of TM tokens: DMA-gather embedding rows, then 2 GEMMs + ReLU."""
    i = pl.program_id(0)
    tm, _ = xbuf.shape
    vocab = emb_hbm.shape[0]
    base = i * tm

    # Manual DMA gather: one row per token, addressed from SMEM token ids.
    for r in range(tm):
        tok = jnp.clip(ids_ref[base + r], 0, vocab - 1)   # defined OOB behavior
        pltpu.make_async_copy(emb_hbm.at[tok], xbuf.at[r], sem.at[0]).start()
    for r in range(tm):
        pltpu.make_async_copy(emb_hbm.at[0], xbuf.at[r], sem.at[0]).wait()

    # MLP: bf16 operands, f32 accumulation (fast MXU path on all chips).
    x = xbuf[...].astype(jnp.bfloat16)                           # (TM, H)
    h = jnp.dot(x, w1_ref[...], preferred_element_type=jnp.float32)
    h = jnp.maximum(h + b1_ref[...], 0.0).astype(jnp.bfloat16)   # (TM, F)
    y = jnp.dot(h, w2_ref[...], preferred_element_type=jnp.float32)
    o_ref[...] = y + b2_ref[...]                                 # (TM, H_out)


def base_quantized_model_forward(input_ids: jax.Array, params, *, tm: int = 32):
    """Equivalent of BaseQuantizedModel.forward(input_ids)."""
    emb, w1, b1, w2, b2 = params
    b, s = input_ids.shape
    n = b * s
    _, hid = emb.shape
    f = w1.shape[1]
    h_out = w2.shape[1]
    assert tm % 8 == 0

    # torch: input_ids.to(torch.long); int32 indices suffice on TPU.
    ids = input_ids.reshape(n).astype(jnp.int32)
    n_pad = pl.cdiv(n, tm) * tm
    if n_pad != n:
        ids = jnp.pad(ids, (0, n_pad - n))        # padded tokens discarded below
    grid = (n_pad // tm,)

    cost = pl.CostEstimate(
        flops=int(2 * n_pad * (hid * f + f * h_out)),
        transcendentals=0,
        bytes_accessed=int(n_pad * hid * 4 + n_pad * h_out * 4
                           + hid * f * 2 + f * h_out * 2 + (f + h_out) * 4),
    )

    out = pl.pallas_call(
        _fwd_kernel,
        out_shape=jax.ShapeDtypeStruct((n_pad, h_out), jnp.float32),
        grid_spec=pltpu.PrefetchScalarGridSpec(
            num_scalar_prefetch=1,                 # token ids -> SMEM
            grid=grid,
            in_specs=[
                pl.BlockSpec(memory_space=pl.ANY),                 # emb in HBM
                pl.BlockSpec((hid, f), lambda i, ids_s: (0, 0)),   # w1 (resident)
                pl.BlockSpec((1, f), lambda i, ids_s: (0, 0)),     # b1 (resident)
                pl.BlockSpec((f, h_out), lambda i, ids_s: (0, 0)), # w2 (resident)
                pl.BlockSpec((1, h_out), lambda i, ids_s: (0, 0)), # b2 (resident)
            ],
            out_specs=pl.BlockSpec((tm, h_out), lambda i, ids_s: (i, 0)),
            scratch_shapes=[
                pltpu.VMEM((tm, hid), jnp.float32),    # gathered embedding rows
                pltpu.SemaphoreType.DMA((1,)),
            ],
        ),
        compiler_params=pltpu.CompilerParams(
            dimension_semantics=("parallel",)),        # v7x: shard token tiles
        cost_estimate=cost,
    )(ids, emb, w1, b1, w2, b2)

    return out[:n].reshape(b, s, h_out)


# ----------------------------------------------------------------------------
if __name__ == "__main__":
    # Small but lane-dense shapes (HIDDEN/FFN multiples of 128, TM multiple of 8).
    BATCH, SEQ, VOCAB, HIDDEN, FFN = 2, 64, 256, 128, 256

    key = jax.random.PRNGKey(0)
    k_ids, k_emb, k_w1, k_b1, k_w2, k_b2 = jax.random.split(key, 6)

    input_ids = jax.random.randint(k_ids, (BATCH, SEQ), 0, VOCAB, dtype=jnp.int32)

    emb = jax.random.normal(k_emb, (VOCAB, HIDDEN), jnp.float32) * 0.1
    w1 = jax.random.normal(k_w1, (HIDDEN, FFN), jnp.float32) * 0.1
    b1 = jax.random.normal(k_b1, (1, FFN), jnp.float32) * 0.1
    w2 = jax.random.normal(k_w2, (FFN, HIDDEN), jnp.float32) * 0.1
    b2 = jax.random.normal(k_b2, (1, HIDDEN), jnp.float32) * 0.1

    # Load time (outside the forward hot path): Quantizer round trip on all
    # params, implemented as a tiled Pallas kernel.
    emb_q, w1_q, b1_q, w2_q, b2_q = (quantize_dequantize(p)
                                     for p in (emb, w1, b1, w2, b2))
    # Matmul weights are fed to the MXU as bf16 (f32 accumulation in-kernel).
    params = (emb_q, w1_q.astype(jnp.bfloat16), b1_q,
              w2_q.astype(jnp.bfloat16), b2_q)

    out = base_quantized_model_forward(input_ids, params, tm=32)
    out = jax.block_until_ready(out)

    # Pure-JAX reference with matched precision (bf16 operands, f32 accum).
    ids_flat = input_ids.reshape(-1)
    x_ref = emb_q[ids_flat].astype(jnp.bfloat16)
    h_ref = jnp.maximum(
        jnp.dot(x_ref, params[1], preferred_element_type=jnp.float32) + b1_q, 0.0)
    ref = (jnp.dot(h_ref.astype(jnp.bfloat16), params[3],
                   preferred_element_type=jnp.float32) + b2_q)
    ref = ref.reshape(BATCH, SEQ, HIDDEN)

    assert out.shape == (BATCH, SEQ, HIDDEN)
    assert out.dtype == jnp.float32
    assert jnp.allclose(out, ref, rtol=1e-3, atol=1e-3), \
        float(jnp.max(jnp.abs(out - ref)))
    print("KERNEL_OK")
</pallas_src>

<mosaic_0001>
module attributes {stable_mosaic.version = 11 : i64} {
  func.func @_quant_dequant_kernel(%arg0: i32, %arg1: memref<2xf32, #tpu.memory_space<smem>>, %arg2: memref<128x128xf32, #tpu.memory_space<vmem>>, %arg3: memref<128x128xf32, #tpu.memory_space<vmem>>) attributes {dimension_semantics = [#tpu.dimension_semantics<parallel>], iteration_bounds = array<i64: 2>, scalar_prefetch = 0 : i64, scratch_operands = 0 : i64, tpu.core_type = #tpu.core_type<tc>, window_params = [{transform_indices = @transform_0, window_bounds = array<i64: 2>}, {transform_indices = @transform_1, window_bounds = array<i64: 128, 128>}, {transform_indices = @transform_2, window_bounds = array<i64: 128, 128>}]} {
    %c0 = arith.constant 0 : index
    %0 = memref.load %arg1[%c0] : memref<2xf32, #tpu.memory_space<smem>>
    %c1 = arith.constant 1 : index
    %1 = memref.load %arg1[%c1] : memref<2xf32, #tpu.memory_space<smem>>
    %c0_0 = arith.constant 0 : index
    %c0_1 = arith.constant 0 : index
    %2 = vector.load %arg2[%c0_0, %c0_1] : memref<128x128xf32, #tpu.memory_space<vmem>>, vector<128x128xf32>
    %3 = vector.broadcast %0 : f32 to vector<128x128xf32>
    %4 = arith.divf %2, %3 : vector<128x128xf32>
    %5 = vector.broadcast %1 : f32 to vector<128x128xf32>
    %6 = arith.addf %4, %5 : vector<128x128xf32>
    %7 = math.roundeven %6 : vector<128x128xf32>
    %cst = arith.constant -1.280000e+02 : f32
    %cst_2 = arith.constant 1.270000e+02 : f32
    %8 = vector.broadcast %cst : f32 to vector<128x128xf32>
    %9 = arith.maximumf %8, %7 : vector<128x128xf32>
    %10 = vector.broadcast %cst_2 : f32 to vector<128x128xf32>
    %11 = arith.minimumf %10, %9 : vector<128x128xf32>
    %12 = arith.fptosi %11 : vector<128x128xf32> to vector<128x128xi8>
    %13 = arith.sitofp %12 : vector<128x128xi8> to vector<128x128xf32>
    %14 = vector.broadcast %1 : f32 to vector<128x128xf32>
    %15 = arith.subf %13, %14 : vector<128x128xf32>
    %16 = vector.broadcast %0 : f32 to vector<128x128xf32>
    %17 = arith.mulf %15, %16 : vector<128x128xf32>
    %c0_3 = arith.constant 0 : index
    %c0_4 = arith.constant 0 : index
    %18 = vector.load %arg3[%c0_3, %c0_4] : memref<128x128xf32, #tpu.memory_space<vmem>>, vector<128x128xf32>
    tpu.vector_store %arg3[%c0_3, %c0_4], %17 {strides = array<i32>} : memref<128x128xf32, #tpu.memory_space<vmem>>, vector<128x128xf32>,
    return
  }
  func.func @transform_0(%arg0: i32) -> i32 {
    %c0_i32 = arith.constant 0 : i32
    %c0_i32_0 = arith.constant 0 : i32
    return %c0_i32 : i32
  }
  func.func @transform_1(%arg0: i32) -> (i32, i32) {
    %c0_i32 = arith.constant 0 : i32
    %c0_i32_0 = arith.constant 0 : i32
    return %arg0, %c0_i32 : i32, i32
  }
  func.func @transform_2(%arg0: i32) -> (i32, i32) {
    %c0_i32 = arith.constant 0 : i32
    %c0_i32_0 = arith.constant 0 : i32
    return %arg0, %c0_i32 : i32, i32
  }
}

</mosaic_0001>

<llo_original>
// kernel: tpu_custom_call.1
$region0: #{tpu_custom_call.1}
  #allocation0 [shape = 'u32[]', space=smem, size = 0x4, offset = 0x4, fixed_abs, tag = 'smem constant byte address 0x4 - core index']
  #allocation1 [shape = 'u32[144,128]{1,0:T(1,128)}', space=vmem, size = 0x12000, scoped, tag = 'internal scratch']
  %s0 = inlined_call_operand.hbm [shape: f32[2], index: 0, kind: input, shape index: {}]
  %s1 = inlined_call_operand.hbm [shape: f32[256,128], index: 1, kind: input, shape index: {}]
  %s2 = inlined_call_operand.hbm [shape: f32[256,128], index: 2, kind: output, shape index: {}]
  %s3 = sld [smem:[#allocation0]]
  $region49: #{tpu_custom_call.1} parent=0
    _
  %s5 = ssub.s32 1, %s3
  %s6 = scalar_select 0, %s5, %s3
  $region1: #{tpu_custom_call.1} parent=0
    #allocation2 [shape = 'u8[512]{0}', space=smem, size = 0x200, scoped, tag = 'input window, operand 0, single buffered']
    #allocation3 [shape = 's32[2]{0}', space=sflag, size = 0x8, scoped, tag = 'scoped memory for tpu_custom_call.1']
    #allocation4 [shape = 's32[2]{0}', space=sflag, size = 0x8, scoped, tag = 'scoped memory for tpu_custom_call.1']
    #allocation5 [shape = 's32[2]{0}', space=sflag, size = 0x8, scoped, tag = 'scoped memory for tpu_custom_call.1']
    #allocation6 [shape = 'u8[131072]{0}', space=vmem, size = 0x20000, scoped, tag = 'input window, operand 1']
    #allocation7 [shape = 'u8[131072]{0}', space=vmem, size = 0x20000, scoped, tag = 'output window, operand 0']
    %7 = vsyncpa [#allocation5], 0
    %8 = vsyncpa [#allocation3], 0
    %s9 = scalar_lea.sflag [#allocation3], 1
    %10 = vsyncpa %s9, 0
    %11 = vsyncpa [#allocation4], 0
    %s12 = scalar_lea.sflag [#allocation4], 1
    %13 = vsyncpa %s12, 0
    loop: start=0, step=1, limit=4
    $region2: #{tpu_custom_call.1} parent=1 // loop_pre_header
      _
    $region3: #{tpu_custom_call.1} parent=1 // loop_header
      %s15 = sphi 0, %s19
      %p16 = scmp.ge.s32.totalorder %s15, 4
      %s23 = sphi 0, %s23
      %s25 = sphi 0, %s23
      %s26 = sphi 0, %s25
      %s40 = sphi 0, %s26
      %s46 = sphi 0, %s48
      %s49 = sphi 0, %s46
      %s50 = sphi 0, %s49
      %s66 = sphi 0, %s50
      %s72 = sphi 0, %s74
      %s75 = sphi 0, %s72
      %s76 = sphi 0, %s75
      %s92 = sphi 0, %s76
    $region4: #{tpu_custom_call.1} parent=1 // loop_header_branch
      %18 = sbr.rel (%p16) target = $region8
    $region5: #{tpu_custom_call.1} parent=1 // loop_body
      %s20 = ssub.s32 %s15, 1
      %s21 = ssub.s32 %s15, 2
      %s22 = sadd.s32 %s15, 1
      %s24 = sadd.s32 %s23, 1
      %p27 = scmp.eq.s32.totalorder %s15, 1
      %p28 = scmp.ne.s32.totalorder %s23, %s25
      %p29 = scmp.eq.s32.totalorder %s15, 0
      %p30 = por %p28, %p29
      %p31 = scmp.ne.s32.totalorder %s23, %s25
      %p32 = scmp.eq.s32.totalorder %s20, 1
      %p33 = por %p31, %p32
      %p34 = scmp.ne.s32.totalorder %s25, %s26
      %p35 = scmp.eq.s32.totalorder %s20, 0
      %p36 = por %p34, %p35
      %p37 = scmp.ne.s32.totalorder %s25, %s26
      %p38 = scmp.eq.s32.totalorder %s21, 1
      %p39 = por %p37, %p38
      %p41 = scmp.ne.s32.totalorder %s26, %s40
      %p42 = scmp.eq.s32.totalorder %s21, 0
      %p43 = por %p41, %p42
      %s44 = ssub.s32 %s15, %s22
      %p45 = scmp.eq.s32.totalorder %s44, 0
      %s47 = sadd.s32 %s46, 1
      %s48 = scalar_select %p45, %s46, %s47
      %p51 = pneg %p45
      %p52 = scmp.eq.s32.totalorder %s15, 1
      %p53 = por %p51, %p52
      %p54 = scmp.ne.s32.totalorder %s46, %s49
      %p55 = scmp.eq.s32.totalorder %s15, 0
      %p56 = por %p54, %p55
      %p57 = scmp.ne.s32.totalorder %s46, %s49
      %p58 = scmp.eq.s32.totalorder %s20, 1
      %p59 = por %p57, %p58
      %p60 = scmp.ne.s32.totalorder %s49, %s50
      %p61 = scmp.eq.s32.totalorder %s20, 0
      %p62 = por %p60, %p61
      %p63 = scmp.ne.s32.totalorder %s49, %s50
      %p64 = scmp.eq.s32.totalorder %s21, 1
      %p65 = por %p63, %p64
      %p67 = scmp.ne.s32.totalorder %s50, %s66
      %p68 = scmp.eq.s32.totalorder %s21, 0
      %p69 = por %p67, %p68
      %s70 = ssub.s32 %s15, %s22
      %p71 = scmp.eq.s32.totalorder %s70, 0
      %s73 = sadd.s32 %s72, 1
      %s74 = scalar_select %p71, %s72, %s73
      %p77 = pneg %p71
      %p78 = scmp.eq.s32.totalorder %s15, 1
      %p79 = por %p77, %p78
      %p80 = scmp.ne.s32.totalorder %s72, %s75
      %p81 = scmp.eq.s32.totalorder %s15, 0
      %p82 = por %p80, %p81
      %p83 = scmp.ne.s32.totalorder %s72, %s75
      %p84 = scmp.eq.s32.totalorder %s20, 1
      %p85 = por %p83, %p84
      %p86 = scmp.ne.s32.totalorder %s75, %s76
      %p87 = scmp.eq.s32.totalorder %s20, 0
      %p88 = por %p86, %p87
      %p89 = scmp.ne.s32.totalorder %s75, %s76
      %p90 = scmp.eq.s32.totalorder %s21, 1
      %p91 = por %p89, %p90
      %p93 = scmp.ne.s32.totalorder %s76, %s92
      %p94 = scmp.eq.s32.totalorder %s21, 0
      %p95 = por %p93, %p94
      %p96 = scmp.le.s32.totalorder 1, %s15
      %p97 = scmp.lt.s32.totalorder %s15, 3
      %p98 = pnand %p96, %p97
      %p99 = pneg %p98
      // Predicated region
      $region9: #{tpu_custom_call.1} parent=5 // pred_check
        _
      $region10: #{tpu_custom_call.1} parent=5 // pred_check_branch
        %101 = sbr.rel (%p98) target = $region12
      $region11: #{tpu_custom_call.1} parent=5 // pred_region
        %s102 = ssub.s32 %s15, 1
        // Predicated region
        $region13: #{tpu_custom_call.1} parent=11 // pred_check
          %p103 = pneg %p36
        $region14: #{tpu_custom_call.1} parent=11 // pred_check_branch
          %105 = sbr.rel (%p103) target = $region16
        $region15: #{tpu_custom_call.1} parent=11 // pred_region
          %s107 = ssub.s32 16, 16
          %108 = vsyncadd [#allocation5], %s107
          %111 = dma.hbm_to_smem %s0, 16, [#allocation2], [#allocation5]
        $region16: #{tpu_custom_call.1} parent=11 // pred_fallthru
          _
      $region12: #{tpu_custom_call.1} parent=5 // pred_fallthru
        _
      %p112 = scmp.lt.s32.totalorder %s15, 2
      // Predicated region
      $region17: #{tpu_custom_call.1} parent=5 // pred_check
        %p113 = pneg %p112
      $region18: #{tpu_custom_call.1} parent=5 // pred_check_branch
        %115 = sbr.rel (%p113) target = $region20
      $region19: #{tpu_custom_call.1} parent=5 // pred_region
        // Predicated region
        $region21: #{tpu_custom_call.1} parent=19 // pred_check
          %p116 = pneg %p56
        $region22: #{tpu_custom_call.1} parent=19 // pred_check_branch
          %118 = sbr.rel (%p116) target = $region24
        $region23: #{tpu_custom_call.1} parent=19 // pred_region
          %s119 = sand.u32 %s46, 1
          %s120 = scalar_lea.sflag [#allocation3], %s119
          %s121 = sand.u32 %s46, 1
          %s122 = smul.addr %s121, 128
          %s123 = scalar_lea.vmem [#allocation6], %s122
          %s124 = smul.u32 16, %s15
          %s126 = ssub.s32 2048, 2048
          %127 = vsyncadd %s120, %s126
          %s128 = smul.addr %s124, 128
          %s129 = scalar_lea.hbm %s1, %s128
          %s130 = sshll.u32 %s123, 4
          %s131 = int_to_ptr.vmem [resolvable:$true] %s130
          %136 = dma.hbm_to_vmem [thread:$0]  %s129, 2048, %s131, %s120, 128, 128, 8
        $region24: #{tpu_custom_call.1} parent=19 // pred_fallthru
          _
      $region20: #{tpu_custom_call.1} parent=5 // pred_fallthru
        _
      %p137 = scmp.le.s32.totalorder 1, %s15
      %p138 = scmp.lt.s32.totalorder %s15, 3
      %p139 = pnand %p137, %p138
      %p140 = pneg %p139
      // Predicated region
      $region25: #{tpu_custom_call.1} parent=5 // pred_check
        _
      $region26: #{tpu_custom_call.1} parent=5 // pred_check_branch
        %142 = sbr.rel (%p139) target = $region28
      $region27: #{tpu_custom_call.1} parent=5 // pred_region
        %s143 = ssub.s32 %s15, 1
        // Predicated region
        $region29: #{tpu_custom_call.1} parent=27 // pred_check
          %p144 = pneg %p36
        $region30: #{tpu_custom_call.1} parent=27 // pred_check_branch
          %146 = sbr.rel (%p144) target = $region32
        $region31: #{tpu_custom_call.1} parent=27 // pred_region
          %147 = dma.done [#allocation5], 16
        $region32: #{tpu_custom_call.1} parent=27 // pred_fallthru
          _
        %s148 = sand.u32 %s49, 1
        %s149 = scalar_lea.sflag [#allocation3], %s148
        %s150 = sand.u32 %s49, 1
        %s151 = smul.addr %s150, 128
        %s152 = scalar_lea.vmem [#allocation6], %s151
        // Predicated region
        $region33: #{tpu_custom_call.1} parent=27 // pred_check
          %p153 = pneg %p62
        $region34: #{tpu_custom_call.1} parent=27 // pred_check_branch
          %155 = sbr.rel (%p153) target = $region36
        $region35: #{tpu_custom_call.1} parent=27 // pred_region
          %156 = dma.done %s149, 2048
        $region36: #{tpu_custom_call.1} parent=27 // pred_fallthru
          _
        %157 = sfence
        %p158 = pneg %p36
        %p159 = pneg %p33
        %s160 = sand.u32 %s49, 1
        %s161 = scalar_lea.sflag [#allocation3], %s160
        %s162 = sand.u32 %s49, 1
        %s163 = smul.addr %s162, 128
        %s164 = scalar_lea.vmem [#allocation6], %s163
        %p165 = pneg %p62
        %p166 = pneg %p59
        %p167 = pneg %p88
        %p168 = pneg %p85
        %s169 = sand.u32 %s75, 1
        %s170 = scalar_lea.sflag [#allocation4], %s169
        %s171 = sand.u32 %s75, 1
        %s172 = smul.addr %s171, 128
        %s173 = scalar_lea.vmem [#allocation7], %s172
        %s174 = smul.u32 16, %s20
        %s175 = smul.u32 16, %s20
        %s176 = sld [smem:[#allocation2]]
        %s177 = sld [smem:[#allocation2 + $0x1]]
        %v178 = vld [vmem:[%s152] sm:$0xff]
        %v179 = vld [vmem:[%s152 + $0x8] sm:$0xff]
        %v180 = vld [vmem:[%s152 + $0x10] sm:$0xff]
        %v181 = vld [vmem:[%s152 + $0x18] sm:$0xff]
        %v182 = vld [vmem:[%s152 + $0x20] sm:$0xff]
        %v183 = vld [vmem:[%s152 + $0x28] sm:$0xff]
        %v184 = vld [vmem:[%s152 + $0x30] sm:$0xff]
        %v185 = vld [vmem:[%s152 + $0x38] sm:$0xff]
        %v186 = vld [vmem:[%s152 + $0x40] sm:$0xff]
        %v187 = vld [vmem:[%s152 + $0x48] sm:$0xff]
        %v188 = vld [vmem:[%s152 + $0x50] sm:$0xff]
        %v189 = vld [vmem:[%s152 + $0x58] sm:$0xff]
        %v190 = vld [vmem:[%s152 + $0x60] sm:$0xff]
        %v191 = vld [vmem:[%s152 + $0x68] sm:$0xff]
        %v192 = vld [vmem:[%s152 + $0x70] sm:$0xff]
        %v193 = vld [vmem:[%s152 + $0x78] sm:$0xff]
        %v194 = vstv %s176
        %v195 = vrcp.pop %v194
        %v196 = vmul.f32 %v178, %v195
        %v197 = vmul.f32 %v179, %v195
        %v198 = vmul.f32 %v180, %v195
        %v199 = vmul.f32 %v181, %v195
        %v200 = vmul.f32 %v182, %v195
        %v201 = vmul.f32 %v183, %v195
        %v202 = vmul.f32 %v184, %v195
        %v203 = vmul.f32 %v185, %v195
        %v204 = vmul.f32 %v186, %v195
        %v205 = vmul.f32 %v187, %v195
        %v206 = vmul.f32 %v188, %v195
        %v207 = vmul.f32 %v189, %v195
        %v208 = vmul.f32 %v190, %v195
        %v209 = vmul.f32 %v191, %v195
        %v210 = vmul.f32 %v192, %v195
        %v211 = vmul.f32 %v193, %v195
        %v212 = vstv %s177
        %v213 = vadd.f32 %v196, %v212
        %v214 = vadd.f32 %v197, %v212
        %v215 = vadd.f32 %v198, %v212
        %v216 = vadd.f32 %v199, %v212
        %v217 = vadd.f32 %v200, %v212
        %v218 = vadd.f32 %v201, %v212
        %v219 = vadd.f32 %v202, %v212
        %v220 = vadd.f32 %v203, %v212
        %v221 = vadd.f32 %v204, %v212
        %v222 = vadd.f32 %v205, %v212
        %v223 = vadd.f32 %v206, %v212
        %v224 = vadd.f32 %v207, %v212
        %v225 = vadd.f32 %v208, %v212
        %v226 = vadd.f32 %v209, %v212
        %v227 = vadd.f32 %v210, %v212
        %v228 = vadd.f32 %v211, %v212
        %v229 = vround.ne.pseudo %v213
        %v230 = vround.ne.pseudo %v214
        %v231 = vround.ne.pseudo %v215
        %v232 = vround.ne.pseudo %v216
        %v233 = vround.ne.pseudo %v217
        %v234 = vround.ne.pseudo %v218
        %v235 = vround.ne.pseudo %v219
        %v236 = vround.ne.pseudo %v220
        %v237 = vround.ne.pseudo %v221
        %v238 = vround.ne.pseudo %v222
        %v239 = vround.ne.pseudo %v223
        %v240 = vround.ne.pseudo %v224
        %v241 = vround.ne.pseudo %v225
        %v242 = vround.ne.pseudo %v226
        %v243 = vround.ne.pseudo %v227
        %v244 = vround.ne.pseudo %v228
        %v245 = vmax.f32 %v229, -128.0
        %v246 = vmax.f32 %v230, -128.0
        %v247 = vmax.f32 %v231, -128.0
        %v248 = vmax.f32 %v232, -128.0
        %v249 = vmax.f32 %v233, -128.0
        %v250 = vmax.f32 %v234, -128.0
        %v251 = vmax.f32 %v235, -128.0
        %v252 = vmax.f32 %v236, -128.0
        %v253 = vmax.f32 %v237, -128.0
        %v254 = vmax.f32 %v238, -128.0
        %v255 = vmax.f32 %v239, -128.0
        %v256 = vmax.f32 %v240, -128.0
        %v257 = vmax.f32 %v241, -128.0
        %v258 = vmax.f32 %v242, -128.0
        %v259 = vmax.f32 %v243, -128.0
        %v260 = vmax.f32 %v244, -128.0
        %v261 = vmin.f32 %v245, 127.0
        %v262 = vmin.f32 %v246, 127.0
        %v263 = vmin.f32 %v247, 127.0
        %v264 = vmin.f32 %v248, 127.0
        %v265 = vmin.f32 %v249, 127.0
        %v266 = vmin.f32 %v250, 127.0
        %v267 = vmin.f32 %v251, 127.0
        %v268 = vmin.f32 %v252, 127.0
        %v269 = vmin.f32 %v253, 127.0
        %v270 = vmin.f32 %v254, 127.0
        %v271 = vmin.f32 %v255, 127.0
        %v272 = vmin.f32 %v256, 127.0
        %v273 = vmin.f32 %v257, 127.0
        %v274 = vmin.f32 %v258, 127.0
        %v275 = vmin.f32 %v259, 127.0
        %v276 = vmin.f32 %v260, 127.0
        %v277 = vmax.f32 %v261, -128.0
        %v278 = vmax.f32 %v262, -128.0
        %v279 = vmax.f32 %v263, -128.0
        %v280 = vmax.f32 %v264, -128.0
        %v281 = vmax.f32 %v265, -128.0
        %v282 = vmax.f32 %v266, -128.0
        %v283 = vmax.f32 %v267, -128.0
        %v284 = vmax.f32 %v268, -128.0
        %v285 = vmax.f32 %v269, -128.0
        %v286 = vmax.f32 %v270, -128.0
        %v287 = vmax.f32 %v271, -128.0
        %v288 = vmax.f32 %v272, -128.0
        %v289 = vmax.f32 %v273, -128.0
        %v290 = vmax.f32 %v274, -128.0
        %v291 = vmax.f32 %v275, -128.0
        %v292 = vmax.f32 %v276, -128.0
        %v293 = vmin.f32 %v277, 127.0
        %v294 = vmin.f32 %v278, 127.0
        %v295 = vmin.f32 %v279, 127.0
        %v296 = vmin.f32 %v280, 127.0
        %v297 = vmin.f32 %v281, 127.0
        %v298 = vmin.f32 %v282, 127.0
        %v299 = vmin.f32 %v283, 127.0
        %v300 = vmin.f32 %v284, 127.0
        %v301 = vmin.f32 %v285, 127.0
        %v302 = vmin.f32 %v286, 127.0
        %v303 = vmin.f32 %v287, 127.0
        %v304 = vmin.f32 %v288, 127.0
        %v305 = vmin.f32 %v289, 127.0
        %v306 = vmin.f32 %v290, 127.0
        %v307 = vmin.f32 %v291, 127.0
        %v308 = vmin.f32 %v292, 127.0
        %v309 = vcvt.f32.s32.to.zero.pseudo %v293
        %v310 = vcvt.f32.s32.to.zero.pseudo %v294
        %v311 = vcvt.f32.s32.to.zero.pseudo %v295
        %v312 = vcvt.f32.s32.to.zero.pseudo %v296
        %v313 = vcvt.f32.s32.to.zero.pseudo %v297
        %v314 = vcvt.f32.s32.to.zero.pseudo %v298
        %v315 = vcvt.f32.s32.to.zero.pseudo %v299
        %v316 = vcvt.f32.s32.to.zero.pseudo %v300
        %v317 = vcvt.f32.s32.to.zero.pseudo %v301
        %v318 = vcvt.f32.s32.to.zero.pseudo %v302
        %v319 = vcvt.f32.s32.to.zero.pseudo %v303
        %v320 = vcvt.f32.s32.to.zero.pseudo %v304
        %v321 = vcvt.f32.s32.to.zero.pseudo %v305
        %v322 = vcvt.f32.s32.to.zero.pseudo %v306
        %v323 = vcvt.f32.s32.to.zero.pseudo %v307
        %v324 = vcvt.f32.s32.to.zero.pseudo %v308
        %v325 = vpack.c.b16 %v310, %v309
        %v326 = vpack.c.b16 %v312, %v311
        %v327 = vpack.c.b8 %v326, %v325
        %v328 = vpack.c.b16 %v314, %v313
        %v329 = vpack.c.b16 %v316, %v315
        %v330 = vpack.c.b8 %v329, %v328
        %v331 = vpack.c.b16 %v318, %v317
        %v332 = vpack.c.b16 %v320, %v319
        %v333 = vpack.c.b8 %v332, %v331
        %v334 = vpack.c.b16 %v322, %v321
        %v335 = vpack.c.b16 %v324, %v323
        %v336 = vpack.c.b8 %v335, %v334
        %v337 = vunpack.c.0.s8 %v327
        %v338 = vunpack.c.1.s8 %v327
        %v339 = vunpack.c.2.s8 %v327
        %v340 = vunpack.c.3.s8 %v327
        %v341 = vunpack.c.0.s8 %v330
        %v342 = vunpack.c.1.s8 %v330
        %v343 = vunpack.c.2.s8 %v330
        %v344 = vunpack.c.3.s8 %v330
        %v345 = vunpack.c.0.s8 %v333
        %v346 = vunpack.c.1.s8 %v333
        %v347 = vunpack.c.2.s8 %v333
        %v348 = vunpack.c.3.s8 %v333
        %v349 = vunpack.c.0.s8 %v336
        %v350 = vunpack.c.1.s8 %v336
        %v351 = vunpack.c.2.s8 %v336
        %v352 = vunpack.c.3.s8 %v336
        %v353 = vcvt.s32.f32 %v337
        %v354 = vcvt.s32.f32 %v338
        %v355 = vcvt.s32.f32 %v339
        %v356 = vcvt.s32.f32 %v340
        %v357 = vcvt.s32.f32 %v341
        %v358 = vcvt.s32.f32 %v342
        %v359 = vcvt.s32.f32 %v343
        %v360 = vcvt.s32.f32 %v344
        %v361 = vcvt.s32.f32 %v345
        %v362 = vcvt.s32.f32 %v346
        %v363 = vcvt.s32.f32 %v347
        %v364 = vcvt.s32.f32 %v348
        %v365 = vcvt.s32.f32 %v349
        %v366 = vcvt.s32.f32 %v350
        %v367 = vcvt.s32.f32 %v351
        %v368 = vcvt.s32.f32 %v352
        %v369 = vsub.f32 %v353, %v212
        %v370 = vsub.f32 %v354, %v212
        %v371 = vsub.f32 %v355, %v212
        %v372 = vsub.f32 %v356, %v212
        %v373 = vsub.f32 %v357, %v212
        %v374 = vsub.f32 %v358, %v212
        %v375 = vsub.f32 %v359, %v212
        %v376 = vsub.f32 %v360, %v212
        %v377 = vsub.f32 %v361, %v212
        %v378 = vsub.f32 %v362, %v212
        %v379 = vsub.f32 %v363, %v212
        %v380 = vsub.f32 %v364, %v212
        %v381 = vsub.f32 %v365, %v212
        %v382 = vsub.f32 %v366, %v212
        %v383 = vsub.f32 %v367, %v212
        %v384 = vsub.f32 %v368, %v212
        %v385 = vmul.f32 %v369, %v194
        %v386 = vmul.f32 %v370, %v194
        %v387 = vmul.f32 %v371, %v194
        %v388 = vmul.f32 %v372, %v194
        %v389 = vmul.f32 %v373, %v194
        %v390 = vmul.f32 %v374, %v194
        %v391 = vmul.f32 %v375, %v194
        %v392 = vmul.f32 %v376, %v194
        %v393 = vmul.f32 %v377, %v194
        %v394 = vmul.f32 %v378, %v194
        %v395 = vmul.f32 %v379, %v194
        %v396 = vmul.f32 %v380, %v194
        %v397 = vmul.f32 %v381, %v194
        %v398 = vmul.f32 %v382, %v194
        %v399 = vmul.f32 %v383, %v194
        %v400 = vmul.f32 %v384, %v194
        %401 = vst [vmem:[%s173] sm:$0xff] %v385
        %402 = vst [vmem:[%s173 + $0x8] sm:$0xff] %v386
        %403 = vst [vmem:[%s173 + $0x10] sm:$0xff] %v387
        %404 = vst [vmem:[%s173 + $0x18] sm:$0xff] %v388
        %405 = vst [vmem:[%s173 + $0x20] sm:$0xff] %v389
        %406 = vst [vmem:[%s173 + $0x28] sm:$0xff] %v390
        %407 = vst [vmem:[%s173 + $0x30] sm:$0xff] %v391
        %408 = vst [vmem:[%s173 + $0x38] sm:$0xff] %v392
        %409 = vst [vmem:[%s173 + $0x40] sm:$0xff] %v393
        %410 = vst [vmem:[%s173 + $0x48] sm:$0xff] %v394
        %411 = vst [vmem:[%s173 + $0x50] sm:$0xff] %v395
        %412 = vst [vmem:[%s173 + $0x58] sm:$0xff] %v396
        %413 = vst [vmem:[%s173 + $0x60] sm:$0xff] %v397
        %414 = vst [vmem:[%s173 + $0x68] sm:$0xff] %v398
        %415 = vst [vmem:[%s173 + $0x70] sm:$0xff] %v399
        %416 = vst [vmem:[%s173 + $0x78] sm:$0xff] %v400
        %s417 = sand.u32 %s75, 1
        %s418 = scalar_lea.sflag [#allocation4], %s417
        %s419 = sand.u32 %s75, 1
        %s420 = smul.addr %s419, 128
        %s421 = scalar_lea.vmem [#allocation7], %s420
        // Predicated region
        $region37: #{tpu_custom_call.1} parent=27 // pred_check
          %p422 = pneg %p85
        $region38: #{tpu_custom_call.1} parent=27 // pred_check_branch
          %424 = sbr.rel (%p422) target = $region40
        $region39: #{tpu_custom_call.1} parent=27 // pred_region
          %s425 = smul.u32 16, %s20
          %s427 = ssub.s32 2048, 2048
          %428 = vsyncadd %s418, %s427
          %s429 = smul.addr %s425, 128
          %s430 = scalar_lea.hbm %s2, %s429
          %s431 = sshll.u32 %s421, 4
          %s432 = int_to_ptr.vmem [resolvable:$true] %s431
          %437 = dma.vmem_to_hbm [thread:$0]  %s432, 2048, %s430, %s418, 128, 128, 8
        $region40: #{tpu_custom_call.1} parent=27 // pred_fallthru
          _
      $region28: #{tpu_custom_call.1} parent=5 // pred_fallthru
        _
      %p438 = scmp.le.s32.totalorder 2, %s15
      // Predicated region
      $region41: #{tpu_custom_call.1} parent=5 // pred_check
        %p439 = pneg %p438
      $region42: #{tpu_custom_call.1} parent=5 // pred_check_branch
        %441 = sbr.rel (%p439) target = $region44
      $region43: #{tpu_custom_call.1} parent=5 // pred_region
        %s442 = ssub.s32 %s15, 2
        // Predicated region
        $region45: #{tpu_custom_call.1} parent=43 // pred_check
          %p443 = pneg %p91
        $region46: #{tpu_custom_call.1} parent=43 // pred_check_branch
          %445 = sbr.rel (%p443) target = $region48
        $region47: #{tpu_custom_call.1} parent=43 // pred_region
          %s446 = sand.u32 %s76, 1
          %s447 = scalar_lea.sflag [#allocation4], %s446
          %s448 = sand.u32 %s76, 1
          %s449 = smul.addr %s448, 128
          %s450 = scalar_lea.vmem [#allocation7], %s449
          %451 = dma.done %s447, 2048
        $region48: #{tpu_custom_call.1} parent=43 // pred_fallthru
          _
      $region44: #{tpu_custom_call.1} parent=5 // pred_fallthru
        _
    $region6: #{tpu_custom_call.1} parent=1 // loop_footer
      %s19 = sadd.s32 1, %s15
    $region7: #{tpu_custom_call.1} parent=1 // loop_footer_branch
      %14 = sbr.rel target = $region3
    $region8: #{tpu_custom_call.1} parent=1 // loop_exit
      _
    %452 = vsyncpa [#allocation3], 1
    %s453 = scalar_lea.sflag [#allocation3], 1
    %454 = vsyncpa %s453, 1
    %455 = vsyncpa [#allocation4], 1
    %s456 = scalar_lea.sflag [#allocation4], 1
    %457 = vsyncpa %s456, 1
    %458 = vsyncpa [#allocation5], 1
    %s459 = scalar_lea.sflag [#allocation5], 1
    %460 = vsyncpa %s459, 1

</llo_original>
